<compile_context>
chip_gen: v5e
topology: v5e:2x2
jax: 0.10.0
libtpu: 0.0.40
codegen_flags: <defaults>
</compile_context>

<pallas_src>
import functools

import jax
import jax.numpy as jnp
from jax.experimental import pallas as pl
from jax.experimental.pallas import tpu as pltpu


def _round_up(x, m):
    return ((x + m - 1) // m) * m


# ----------------------------------------------------------------------------
# Kernel 1: conv-as-matmul (bf16 MXU) + bias, with fused per-channel
#           sum / sum-of-squares accumulation for BatchNorm statistics.
# ----------------------------------------------------------------------------
def _conv_bias_stats_kernel(a_ref, w_ref, b_ref, y_ref, sum_ref, sq_ref,
                            *, m_true, tile_m):
    i = pl.program_id(0)

    @pl.when(i == 0)
    def _():
        sum_ref[...] = jnp.zeros_like(sum_ref)
        sq_ref[...] = jnp.zeros_like(sq_ref)

    # bf16 x bf16 -> f32 accumulate on the MXU (single pass).
    y = jnp.dot(a_ref[...], w_ref[...],
                preferred_element_type=jnp.float32) + b_ref[...]
    y_ref[...] = y

    # Mask rows that are only M-padding so BN statistics use the true M.
    row = i * tile_m + jax.lax.broadcasted_iota(jnp.int32, (tile_m, 1), 0)
    yv = jnp.where(row < m_true, y, 0.0)
    sum_ref[...] += jnp.sum(yv, axis=0, keepdims=True)
    sq_ref[...] += jnp.sum(yv * yv, axis=0, keepdims=True)


def conv_bias_stats(a_bf16, w_bf16, b_f32, m_true, *, tile_m):
    """a: (Mp, Kp) bf16, w: (Kp, Cpad) bf16, b: (1, Cpad) f32.
    Returns y (Mp, Cpad) f32, sum (1, Cpad) f32, sumsq (1, Cpad) f32."""
    mp, kp = a_bf16.shape
    cpad = w_bf16.shape[1]
    kernel = functools.partial(_conv_bias_stats_kernel,
                               m_true=m_true, tile_m=tile_m)
    return pl.pallas_call(
        kernel,
        out_shape=(jax.ShapeDtypeStruct((mp, cpad), jnp.float32),
                   jax.ShapeDtypeStruct((1, cpad), jnp.float32),
                   jax.ShapeDtypeStruct((1, cpad), jnp.float32)),
        grid=(mp // tile_m,),
        in_specs=[
            pl.BlockSpec((tile_m, kp), lambda i: (i, 0)),
            pl.BlockSpec((kp, cpad), lambda i: (0, 0)),
            pl.BlockSpec((1, cpad), lambda i: (0, 0)),
        ],
        out_specs=(
            pl.BlockSpec((tile_m, cpad), lambda i: (i, 0)),
            pl.BlockSpec((1, cpad), lambda i: (0, 0)),   # resident accumulator
            pl.BlockSpec((1, cpad), lambda i: (0, 0)),   # resident accumulator
        ),
        compiler_params=pltpu.CompilerParams(
            dimension_semantics=("arbitrary",)),          # reduction for stats
    )(a_bf16, w_bf16, b_f32)


# ----------------------------------------------------------------------------
# Kernel 2a (with_pos=True): fused BN affine + PA depthwise 3x3 + sigmoid gate.
#   One grid step per batch item; input is a single spatially halo-padded slab.
#   The BN affine is applied in-kernel; halo positions are masked to 0 so the
#   depthwise conv sees exactly the zero-padding PyTorch applies after BN.
# ----------------------------------------------------------------------------
def _bn_pa_kernel(yp_ref, s_ref, t_ref, w_ref, pb_ref, o_ref):
    hp, wp, c = yp_ref.shape
    ho, wo = hp - 2, wp - 2

    yp = yp_ref[...]                                   # (Hp, Wp, C) raw conv+bias
    s = s_ref[...].reshape(1, 1, c)                    # gamma * rsqrt(var+eps)
    t = t_ref[...].reshape(1, 1, c)                    # beta  - mean * s

    ri = jax.lax.broadcasted_iota(jnp.int32, (hp, wp, 1), 0)
    ci = jax.lax.broadcasted_iota(jnp.int32, (hp, wp, 1), 1)
    valid = (ri >= 1) & (ri <= ho) & (ci >= 1) & (ci <= wo)
    z = jnp.where(valid, yp * s + t, 0.0)              # BN-normalized, 0-halo

    w9 = w_ref[...]                                    # (9, C)
    acc = jnp.zeros((ho, wo, c), jnp.float32) + pb_ref[...].reshape(1, 1, c)
    k = 0
    for di in range(3):                                # static unroll, 3x3 taps
        for dj in range(3):
            acc = acc + z[di:di + ho, dj:dj + wo, :] * w9[k].reshape(1, 1, c)
            k += 1

    zc = z[1:1 + ho, 1:1 + wo, :]
    o_ref[...] = zc * jax.nn.sigmoid(acc)


def bn_pa(yp, scale, shift, w9, pb):
    """yp: (B, Ho+2, Wo+2, Cpad) raw conv+bias, zero halo.  Returns (B,Ho,Wo,Cpad)."""
    bsz, hp, wp, cpad = yp.shape
    ho, wo = hp - 2, wp - 2
    return pl.pallas_call(
        _bn_pa_kernel,
        out_shape=jax.ShapeDtypeStruct((bsz, ho, wo, cpad), jnp.float32),
        grid=(bsz,),
        in_specs=[
            pl.BlockSpec((None, hp, wp, cpad), lambda b: (b, 0, 0, 0)),
            pl.BlockSpec((1, cpad), lambda b: (0, 0)),
            pl.BlockSpec((1, cpad), lambda b: (0, 0)),
            pl.BlockSpec((9, cpad), lambda b: (0, 0)),
            pl.BlockSpec((1, cpad), lambda b: (0, 0)),
        ],
        out_specs=pl.BlockSpec((None, ho, wo, cpad), lambda b: (b, 0, 0, 0)),
        compiler_params=pltpu.CompilerParams(dimension_semantics=("parallel",)),
    )(yp, scale, shift, w9, pb)


# ----------------------------------------------------------------------------
# Kernel 2b (with_pos=False): tiled BN affine only.
# ----------------------------------------------------------------------------
def _bn_apply_kernel(y_ref, s_ref, t_ref, o_ref):
    o_ref[...] = y_ref[...] * s_ref[...] + t_ref[...]


def bn_apply(y, scale, shift, *, tile_m):
    mp, cpad = y.shape
    return pl.pallas_call(
        _bn_apply_kernel,
        out_shape=jax.ShapeDtypeStruct((mp, cpad), jnp.float32),
        grid=(mp // tile_m,),
        in_specs=[
            pl.BlockSpec((tile_m, cpad), lambda i: (i, 0)),
            pl.BlockSpec((1, cpad), lambda i: (0, 0)),
            pl.BlockSpec((1, cpad), lambda i: (0, 0)),
        ],
        out_specs=pl.BlockSpec((tile_m, cpad), lambda i: (i, 0)),
        compiler_params=pltpu.CompilerParams(dimension_semantics=("parallel",)),
    )(y, scale, shift)


# ----------------------------------------------------------------------------
# Glue: im2col for the strided patch-embedding conv.
#   Built directly in (B, Ho, Wo, ki, kj, c) row-major order -> no transpose copy.
# ----------------------------------------------------------------------------
def im2col(x_nchw, k, stride, pad):
    b, c, h, w = x_nchw.shape
    x_nhwc = jnp.transpose(x_nchw, (0, 2, 3, 1))       # small: in_ch is tiny
    xp = jnp.pad(x_nhwc, ((0, 0), (pad, pad), (pad, pad), (0, 0)))
    ho = (h + 2 * pad - k) // stride + 1
    wo = (w + 2 * pad - k) // stride + 1
    cols = [xp[:, ki:ki + stride * ho:stride, kj:kj + stride * wo:stride, :]
            for ki in range(k) for kj in range(k)]
    patches = jnp.stack(cols, axis=3)                  # (B, Ho, Wo, K*K, C)
    return patches.reshape(b * ho * wo, k * k * c), ho, wo


# ----------------------------------------------------------------------------
# PatchEmbed forward
# ----------------------------------------------------------------------------
@functools.partial(jax.jit, static_argnames=("patch_size", "with_pos"))
def patch_embed_forward(x, params, *, patch_size, with_pos):
    """x: (B, in_ch, H, W) NCHW.  Returns ((B, L, out_ch), (Hp, Wp))."""
    bsz, in_ch, h, w = x.shape
    k = patch_size + 1
    pad = patch_size // 2
    out_ch = params["conv_w"].shape[0]
    cpad = _round_up(out_ch, 128)                      # lane-dense channel axis

    def padc(v):                                       # (x, out_ch) -> (x, cpad)
        v2 = v.reshape(1, out_ch) if v.ndim == 1 else v
        return jnp.pad(v2, ((0, 0), (0, cpad - out_ch))).astype(jnp.float32)

    # --- conv (stride=patch_size) as lane-dense bf16 matmul + fused BN stats ---
    a, ho, wo = im2col(x, k, patch_size, pad)          # (M, K*K*in_ch), cols (ki,kj,c)
    m, kd = a.shape
    kp = _round_up(kd, 128)
    tile_m = min(256, _round_up(m, 8))
    mp = _round_up(m, tile_m)

    a_p = jnp.pad(a, ((0, mp - m), (0, kp - kd))).astype(jnp.bfloat16)
    w_mat = params["conv_w"].transpose(2, 3, 1, 0).reshape(kd, out_ch)  # (ki,kj,c)->o
    w_p = jnp.pad(w_mat, ((0, kp - kd), (0, cpad - out_ch))).astype(jnp.bfloat16)
    b_p = padc(params["conv_b"])

    y, ssum, ssq = conv_bias_stats(a_p, w_p, b_p, m, tile_m=tile_m)  # (Mp,Cpad) f32

    # --- BatchNorm affine coefficients (training-mode batch stats, biased var) ---
    mean = ssum / m
    var = jnp.maximum(ssq / m - mean * mean, 0.0)
    inv = jax.lax.rsqrt(var + 1e-5)
    scale = padc(params["bn_gamma"]) * inv             # (1, Cpad)
    shift = padc(params["bn_beta"]) - mean * scale     # (1, Cpad)

    if with_pos:
        # --- fused BN affine + PA gate, one halo-padded slab per batch item ---
        y4 = y[:m].reshape(bsz, ho, wo, cpad)
        yp = jnp.pad(y4, ((0, 0), (1, 1), (1, 1), (0, 0)))
        w9 = jnp.pad(params["pa_w"].reshape(out_ch, 9).T,
                     ((0, 0), (0, cpad - out_ch))).astype(jnp.float32)
        pb = padc(params["pa_b"])
        y_out = bn_pa(yp, scale, shift, w9, pb)        # (B, Ho, Wo, Cpad)
        out = y_out.reshape(bsz, ho * wo, cpad)[:, :, :out_ch]
    else:
        y_out = bn_apply(y, scale, shift, tile_m=tile_m)   # (Mp, Cpad)
        out = y_out[:m, :out_ch].reshape(bsz, ho * wo, out_ch)

    return out, (h // patch_size, w // patch_size)


# ----------------------------------------------------------------------------
# Pure-JAX reference (sanity check)
# ----------------------------------------------------------------------------
def reference_forward(x, params, *, patch_size, with_pos):
    k = patch_size + 1
    pad = patch_size // 2
    out_ch = params["conv_w"].shape[0]
    y = jax.lax.conv_general_dilated(
        x, params["conv_w"], (patch_size, patch_size),
        padding=[(pad, pad), (pad, pad)],
        dimension_numbers=("NCHW", "OIHW", "NCHW"),
        precision=jax.lax.Precision.HIGHEST,
    ) + params["conv_b"][None, :, None, None]
    mean = y.mean(axis=(0, 2, 3), keepdims=True)
    var = jnp.square(y - mean).mean(axis=(0, 2, 3), keepdims=True)
    y = (y - mean) * jax.lax.rsqrt(var + 1e-5)
    y = y * params["bn_gamma"][None, :, None, None] + params["bn_beta"][None, :, None, None]
    if with_pos:
        z = jax.lax.conv_general_dilated(
            y, params["pa_w"], (1, 1), padding=[(1, 1), (1, 1)],
            dimension_numbers=("NCHW", "OIHW", "NCHW"),
            feature_group_count=out_ch,
            precision=jax.lax.Precision.HIGHEST,
        ) + params["pa_b"][None, :, None, None]
        y = y * jax.nn.sigmoid(z)
    b = x.shape[0]
    out = y.reshape(b, out_ch, -1).transpose(0, 2, 1)
    return out, (x.shape[2] // patch_size, x.shape[3] // patch_size)


if __name__ == "__main__":
    B, in_ch, H, W = 2, 4, 16, 16
    patch_size, out_ch = 4, 32
    K = patch_size + 1

    key = jax.random.PRNGKey(0)
    ks = jax.random.split(key, 7)
    params = {
        "conv_w": 0.05 * jax.random.normal(ks[0], (out_ch, in_ch, K, K), jnp.float32),
        "conv_b": 0.05 * jax.random.normal(ks[1], (out_ch,), jnp.float32),
        "bn_gamma": 1.0 + 0.1 * jax.random.normal(ks[2], (out_ch,), jnp.float32),
        "bn_beta": 0.1 * jax.random.normal(ks[3], (out_ch,), jnp.float32),
        "pa_w": 0.1 * jax.random.normal(ks[4], (out_ch, 1, 3, 3), jnp.float32),
        "pa_b": 0.1 * jax.random.normal(ks[5], (out_ch,), jnp.float32),
    }
    x = jax.random.normal(ks[6], (B, in_ch, H, W), jnp.float32)

    for with_pos in (True, False):      # exercise both the PA and plain-BN paths
        out, (hp, wp) = patch_embed_forward(x, params, patch_size=patch_size,
                                            with_pos=with_pos)
        out = jax.block_until_ready(out)
        ref, (hp_r, wp_r) = reference_forward(x, params, patch_size=patch_size,
                                              with_pos=with_pos)
        assert out.shape == (B, hp * wp, out_ch), out.shape
        assert (hp, wp) == (hp_r, wp_r) == (H // patch_size, W // patch_size)
        max_err = float(jnp.abs(out - ref).max())
        # tolerance covers bf16 MXU inputs (f32 accumulate); typical err ~1e-3
        assert jnp.allclose(out, ref, atol=2e-2, rtol=2e-2), (with_pos, max_err)

    print("KERNEL_OK")
</pallas_src>

<mosaic_0001>
module attributes {stable_mosaic.version = 11 : i64} {
  func.func @_bn_pa_kernel(%arg0: i32, %arg1: memref<1x6x6x128xf32, #tpu.memory_space<vmem>>, %arg2: memref<1x128xf32, #tpu.memory_space<vmem>>, %arg3: memref<1x128xf32, #tpu.memory_space<vmem>>, %arg4: memref<9x128xf32, #tpu.memory_space<vmem>>, %arg5: memref<1x128xf32, #tpu.memory_space<vmem>>, %arg6: memref<1x4x4x128xf32, #tpu.memory_space<vmem>>) attributes {dimension_semantics = [#tpu.dimension_semantics<parallel>], iteration_bounds = array<i64: 2>, scalar_prefetch = 0 : i64, scratch_operands = 0 : i64, tpu.core_type = #tpu.core_type<tc>, window_params = [{transform_indices = @transform_0, window_bounds = array<i64: 1, 6, 6, 128>}, {pipeline_mode = #tpu.pipeline_mode<synchronous>, transform_indices = @transform_1, window_bounds = array<i64: 1, 128>}, {pipeline_mode = #tpu.pipeline_mode<synchronous>, transform_indices = @transform_2, window_bounds = array<i64: 1, 128>}, {pipeline_mode = #tpu.pipeline_mode<synchronous>, transform_indices = @transform_3, window_bounds = array<i64: 9, 128>}, {pipeline_mode = #tpu.pipeline_mode<synchronous>, transform_indices = @transform_4, window_bounds = array<i64: 1, 128>}, {transform_indices = @transform_5, window_bounds = array<i64: 1, 4, 4, 128>}]} {
    %c0 = arith.constant 0 : index
    %c0_0 = arith.constant 0 : index
    %c0_1 = arith.constant 0 : index
    %c0_2 = arith.constant 0 : index
    %0 = vector.load %arg1[%c0, %c0_0, %c0_1, %c0_2] : memref<1x6x6x128xf32, #tpu.memory_space<vmem>>, vector<1x6x6x128xf32>
    %1 = vector.shape_cast %0 : vector<1x6x6x128xf32> to vector<6x6x128xf32>
    %c0_3 = arith.constant 0 : index
    %c0_4 = arith.constant 0 : index
    %2 = vector.load %arg2[%c0_3, %c0_4] : memref<1x128xf32, #tpu.memory_space<vmem>>, vector<1x128xf32>
    %3 = vector.shape_cast %2 : vector<1x128xf32> to vector<1x1x128xf32>
    %c0_5 = arith.constant 0 : index
    %c0_6 = arith.constant 0 : index
    %4 = vector.load %arg3[%c0_5, %c0_6] : memref<1x128xf32, #tpu.memory_space<vmem>>, vector<1x128xf32>
    %5 = vector.shape_cast %4 : vector<1x128xf32> to vector<1x1x128xf32>
    %6 = tpu.iota {dimensions = array<i32: 0>} : vector<6x6x1xi32>
    %7 = tpu.iota {dimensions = array<i32: 1>} : vector<6x6x1xi32>
    %c1_i32 = arith.constant 1 : i32
    %8 = vector.broadcast %c1_i32 : i32 to vector<6x6x1xi32>
    %9 = arith.cmpi sge, %6, %8 : vector<6x6x1xi32>
    %c4_i32 = arith.constant 4 : i32
    %10 = vector.broadcast %c4_i32 : i32 to vector<6x6x1xi32>
    %11 = arith.cmpi sle, %6, %10 : vector<6x6x1xi32>
    %12 = arith.andi %9, %11 : vector<6x6x1xi1>
    %c1_i32_7 = arith.constant 1 : i32
    %13 = vector.broadcast %c1_i32_7 : i32 to vector<6x6x1xi32>
    %14 = arith.cmpi sge, %7, %13 : vector<6x6x1xi32>
    %15 = arith.andi %12, %14 : vector<6x6x1xi1>
    %c4_i32_8 = arith.constant 4 : i32
    %16 = vector.broadcast %c4_i32_8 : i32 to vector<6x6x1xi32>
    %17 = arith.cmpi sle, %7, %16 : vector<6x6x1xi32>
    %18 = arith.andi %15, %17 : vector<6x6x1xi1>
    %19 = vector.broadcast %3 : vector<1x1x128xf32> to vector<6x6x128xf32>
    %20 = arith.mulf %1, %19 : vector<6x6x128xf32>
    %21 = vector.broadcast %5 : vector<1x1x128xf32> to vector<6x6x128xf32>
    %22 = arith.addf %20, %21 : vector<6x6x128xf32>
    %cst = arith.constant 0.000000e+00 : f32
    %23 = vector.shape_cast %18 : vector<6x6x1xi1> to vector<6x6x1xi1>
    %24 = vector.broadcast %23 : vector<6x6x1xi1> to vector<6x6x128xi1>
    %25 = vector.broadcast %cst : f32 to vector<6x6x128xf32>
    %26 = arith.select %24, %22, %25 : vector<6x6x128xi1>, vector<6x6x128xf32>
    %c0_9 = arith.constant 0 : index
    %c0_10 = arith.constant 0 : index
    %27 = vector.load %arg4[%c0_9, %c0_10] : memref<9x128xf32, #tpu.memory_space<vmem>>, vector<9x128xf32>
    %cst_11 = arith.constant 0.000000e+00 : f32
    %28 = vector.broadcast %cst_11 : f32 to vector<4x4x128xf32>
    %c0_12 = arith.constant 0 : index
    %c0_13 = arith.constant 0 : index
    %29 = vector.load %arg5[%c0_12, %c0_13] : memref<1x128xf32, #tpu.memory_space<vmem>>, vector<1x128xf32>
    %30 = vector.shape_cast %29 : vector<1x128xf32> to vector<1x1x128xf32>
    %31 = vector.broadcast %30 : vector<1x1x128xf32> to vector<4x4x128xf32>
    %32 = arith.addf %28, %31 : vector<4x4x128xf32>
    %33 = vector.extract_strided_slice %26 {offsets = [0, 0, 0], sizes = [4, 4, 128], strides = [1, 1, 1]} : vector<6x6x128xf32> to vector<4x4x128xf32>
    %34 = vector.extract_strided_slice %27 {offsets = [0, 0], sizes = [1, 128], strides = [1, 1]} : vector<9x128xf32> to vector<1x128xf32>
    %35 = vector.shape_cast %34 : vector<1x128xf32> to vector<128xf32>
    %36 = vector.shape_cast %35 : vector<128xf32> to vector<1x1x128xf32>
    %37 = vector.broadcast %36 : vector<1x1x128xf32> to vector<4x4x128xf32>
    %38 = arith.mulf %33, %37 : vector<4x4x128xf32>
    %39 = arith.addf %32, %38 : vector<4x4x128xf32>
    %40 = vector.extract_strided_slice %26 {offsets = [0, 1, 0], sizes = [4, 4, 128], strides = [1, 1, 1]} : vector<6x6x128xf32> to vector<4x4x128xf32>
    %41 = vector.extract_strided_slice %27 {offsets = [1, 0], sizes = [1, 128], strides = [1, 1]} : vector<9x128xf32> to vector<1x128xf32>
    %42 = vector.shape_cast %41 : vector<1x128xf32> to vector<128xf32>
    %43 = vector.shape_cast %42 : vector<128xf32> to vector<1x1x128xf32>
    %44 = vector.broadcast %43 : vector<1x1x128xf32> to vector<4x4x128xf32>
    %45 = arith.mulf %40, %44 : vector<4x4x128xf32>
    %46 = arith.addf %39, %45 : vector<4x4x128xf32>
    %47 = vector.extract_strided_slice %26 {offsets = [0, 2, 0], sizes = [4, 4, 128], strides = [1, 1, 1]} : vector<6x6x128xf32> to vector<4x4x128xf32>
    %48 = vector.extract_strided_slice %27 {offsets = [2, 0], sizes = [1, 128], strides = [1, 1]} : vector<9x128xf32> to vector<1x128xf32>
    %49 = vector.shape_cast %48 : vector<1x128xf32> to vector<128xf32>
    %50 = vector.shape_cast %49 : vector<128xf32> to vector<1x1x128xf32>
    %51 = vector.broadcast %50 : vector<1x1x128xf32> to vector<4x4x128xf32>
    %52 = arith.mulf %47, %51 : vector<4x4x128xf32>
    %53 = arith.addf %46, %52 : vector<4x4x128xf32>
    %54 = vector.extract_strided_slice %26 {offsets = [1, 0, 0], sizes = [4, 4, 128], strides = [1, 1, 1]} : vector<6x6x128xf32> to vector<4x4x128xf32>
    %55 = vector.extract_strided_slice %27 {offsets = [3, 0], sizes = [1, 128], strides = [1, 1]} : vector<9x128xf32> to vector<1x128xf32>
    %56 = vector.shape_cast %55 : vector<1x128xf32> to vector<128xf32>
    %57 = vector.shape_cast %56 : vector<128xf32> to vector<1x1x128xf32>
    %58 = vector.broadcast %57 : vector<1x1x128xf32> to vector<4x4x128xf32>
    %59 = arith.mulf %54, %58 : vector<4x4x128xf32>
    %60 = arith.addf %53, %59 : vector<4x4x128xf32>
    %61 = vector.extract_strided_slice %26 {offsets = [1, 1, 0], sizes = [4, 4, 128], strides = [1, 1, 1]} : vector<6x6x128xf32> to vector<4x4x128xf32>
    %62 = vector.extract_strided_slice %27 {offsets = [4, 0], sizes = [1, 128], strides = [1, 1]} : vector<9x128xf32> to vector<1x128xf32>
    %63 = vector.shape_cast %62 : vector<1x128xf32> to vector<128xf32>
    %64 = vector.shape_cast %63 : vector<128xf32> to vector<1x1x128xf32>
    %65 = vector.broadcast %64 : vector<1x1x128xf32> to vector<4x4x128xf32>
    %66 = arith.mulf %61, %65 : vector<4x4x128xf32>
    %67 = arith.addf %60, %66 : vector<4x4x128xf32>
    %68 = vector.extract_strided_slice %26 {offsets = [1, 2, 0], sizes = [4, 4, 128], strides = [1, 1, 1]} : vector<6x6x128xf32> to vector<4x4x128xf32>
    %69 = vector.extract_strided_slice %27 {offsets = [5, 0], sizes = [1, 128], strides = [1, 1]} : vector<9x128xf32> to vector<1x128xf32>
    %70 = vector.shape_cast %69 : vector<1x128xf32> to vector<128xf32>
    %71 = vector.shape_cast %70 : vector<128xf32> to vector<1x1x128xf32>
    %72 = vector.broadcast %71 : vector<1x1x128xf32> to vector<4x4x128xf32>
    %73 = arith.mulf %68, %72 : vector<4x4x128xf32>
    %74 = arith.addf %67, %73 : vector<4x4x128xf32>
    %75 = vector.extract_strided_slice %26 {offsets = [2, 0, 0], sizes = [4, 4, 128], strides = [1, 1, 1]} : vector<6x6x128xf32> to vector<4x4x128xf32>
    %76 = vector.extract_strided_slice %27 {offsets = [6, 0], sizes = [1, 128], strides = [1, 1]} : vector<9x128xf32> to vector<1x128xf32>
    %77 = vector.shape_cast %76 : vector<1x128xf32> to vector<128xf32>
    %78 = vector.shape_cast %77 : vector<128xf32> to vector<1x1x128xf32>
    %79 = vector.broadcast %78 : vector<1x1x128xf32> to vector<4x4x128xf32>
    %80 = arith.mulf %75, %79 : vector<4x4x128xf32>
    %81 = arith.addf %74, %80 : vector<4x4x128xf32>
    %82 = vector.extract_strided_slice %26 {offsets = [2, 1, 0], sizes = [4, 4, 128], strides = [1, 1, 1]} : vector<6x6x128xf32> to vector<4x4x128xf32>
    %83 = vector.extract_strided_slice %27 {offsets = [7, 0], sizes = [1, 128], strides = [1, 1]} : vector<9x128xf32> to vector<1x128xf32>
    %84 = vector.shape_cast %83 : vector<1x128xf32> to vector<128xf32>
    %85 = vector.shape_cast %84 : vector<128xf32> to vector<1x1x128xf32>
    %86 = vector.broadcast %85 : vector<1x1x128xf32> to vector<4x4x128xf32>
    %87 = arith.mulf %82, %86 : vector<4x4x128xf32>
    %88 = arith.addf %81, %87 : vector<4x4x128xf32>
    %89 = vector.extract_strided_slice %26 {offsets = [2, 2, 0], sizes = [4, 4, 128], strides = [1, 1, 1]} : vector<6x6x128xf32> to vector<4x4x128xf32>
    %90 = vector.extract_strided_slice %27 {offsets = [8, 0], sizes = [1, 128], strides = [1, 1]} : vector<9x128xf32> to vector<1x128xf32>
    %91 = vector.shape_cast %90 : vector<1x128xf32> to vector<128xf32>
    %92 = vector.shape_cast %91 : vector<128xf32> to vector<1x1x128xf32>
    %93 = vector.broadcast %92 : vector<1x1x128xf32> to vector<4x4x128xf32>
    %94 = arith.mulf %89, %93 : vector<4x4x128xf32>
    %95 = arith.addf %88, %94 : vector<4x4x128xf32>
    %96 = vector.extract_strided_slice %26 {offsets = [1, 1, 0], sizes = [4, 4, 128], strides = [1, 1, 1]} : vector<6x6x128xf32> to vector<4x4x128xf32>
    %97 = arith.negf %95 : vector<4x4x128xf32>
    %98 = math.exp %97 : vector<4x4x128xf32>
    %cst_14 = arith.constant 1.000000e+00 : f32
    %99 = vector.broadcast %cst_14 : f32 to vector<4x4x128xf32>
    %100 = arith.addf %99, %98 : vector<4x4x128xf32>
    %101 = arith.divf %99, %100 : vector<4x4x128xf32>
    %102 = arith.mulf %96, %101 : vector<4x4x128xf32>
    %c0_15 = arith.constant 0 : index
    %c0_16 = arith.constant 0 : index
    %c0_17 = arith.constant 0 : index
    %c0_18 = arith.constant 0 : index
    %103 = vector.load %arg6[%c0_15, %c0_16, %c0_17, %c0_18] : memref<1x4x4x128xf32, #tpu.memory_space<vmem>>, vector<1x4x4x128xf32>
    %104 = vector.shape_cast %103 : vector<1x4x4x128xf32> to vector<4x4x128xf32>
    %105 = vector.shape_cast %102 : vector<4x4x128xf32> to vector<1x4x4x128xf32>
    tpu.vector_store %arg6[%c0_15, %c0_16, %c0_17, %c0_18], %105 {strides = array<i32>} : memref<1x4x4x128xf32, #tpu.memory_space<vmem>>, vector<1x4x4x128xf32>,
    return
  }
  func.func @transform_0(%arg0: i32) -> (i32, i32, i32, i32) {
    %c0_i32 = arith.constant 0 : i32
    %c0_i32_0 = arith.constant 0 : i32
    %c0_i32_1 = arith.constant 0 : i32
    %c0_i32_2 = arith.constant 0 : i32
    return %arg0, %c0_i32, %c0_i32_0, %c0_i32_1 : i32, i32, i32, i32
  }
  func.func @transform_1(%arg0: i32) -> (i32, i32) {
    %c0_i32 = arith.constant 0 : i32
    %c0_i32_0 = arith.constant 0 : i32
    %c0_i32_1 = arith.constant 0 : i32
    return %c0_i32, %c0_i32_0 : i32, i32
  }
  func.func @transform_2(%arg0: i32) -> (i32, i32) {
    %c0_i32 = arith.constant 0 : i32
    %c0_i32_0 = arith.constant 0 : i32
    %c0_i32_1 = arith.constant 0 : i32
    return %c0_i32, %c0_i32_0 : i32, i32
  }
  func.func @transform_3(%arg0: i32) -> (i32, i32) {
    %c0_i32 = arith.constant 0 : i32
    %c0_i32_0 = arith.constant 0 : i32
    %c0_i32_1 = arith.constant 0 : i32
    return %c0_i32, %c0_i32_0 : i32, i32
  }
  func.func @transform_4(%arg0: i32) -> (i32, i32) {
    %c0_i32 = arith.constant 0 : i32
    %c0_i32_0 = arith.constant 0 : i32
    %c0_i32_1 = arith.constant 0 : i32
    return %c0_i32, %c0_i32_0 : i32, i32
  }
  func.func @transform_5(%arg0: i32) -> (i32, i32, i32, i32) {
    %c0_i32 = arith.constant 0 : i32
    %c0_i32_0 = arith.constant 0 : i32
    %c0_i32_1 = arith.constant 0 : i32
    %c0_i32_2 = arith.constant 0 : i32
    return %arg0, %c0_i32, %c0_i32_0, %c0_i32_1 : i32, i32, i32, i32
  }
}

module attributes {stable_mosaic.version = 11 : i64} {
  func.func @_conv_bias_stats_kernel(%arg0: i32, %arg1: memref<32x128xbf16, #tpu.memory_space<vmem>>, %arg2: memref<128x128xbf16, #tpu.memory_space<vmem>>, %arg3: memref<1x128xf32, #tpu.memory_space<vmem>>, %arg4: memref<32x128xf32, #tpu.memory_space<vmem>>, %arg5: memref<1x128xf32, #tpu.memory_space<vmem>>, %arg6: memref<1x128xf32, #tpu.memory_space<vmem>>) attributes {dimension_semantics = [#tpu.dimension_semantics<arbitrary>], iteration_bounds = array<i64: 1>, scalar_prefetch = 0 : i64, scratch_operands = 0 : i64, tpu.core_type = #tpu.core_type<tc>, window_params = [{transform_indices = @transform_0, window_bounds = array<i64: 32, 128>}, {pipeline_mode = #tpu.pipeline_mode<synchronous>, transform_indices = @transform_1, window_bounds = array<i64: 128, 128>}, {pipeline_mode = #tpu.pipeline_mode<synchronous>, transform_indices = @transform_2, window_bounds = array<i64: 1, 128>}, {transform_indices = @transform_3, window_bounds = array<i64: 32, 128>}, {pipeline_mode = #tpu.pipeline_mode<synchronous>, transform_indices = @transform_4, window_bounds = array<i64: 1, 128>}, {pipeline_mode = #tpu.pipeline_mode<synchronous>, transform_indices = @transform_5, window_bounds = array<i64: 1, 128>}]} {
    %c0_i32 = arith.constant 0 : i32
    %0 = arith.cmpi eq, %arg0, %c0_i32 : i32
    %1 = arith.extui %0 : i1 to i32
    %c0_i32_0 = arith.constant 0 : i32
    %2 = arith.cmpi ne, %1, %c0_i32_0 : i32
    scf.if %2 {
      %cst_20 = arith.constant 0.000000e+00 : f32
      %31 = vector.broadcast %cst_20 : f32 to vector<1x128xf32>
      %c0_21 = arith.constant 0 : index
      %c0_22 = arith.constant 0 : index
      %32 = vector.load %arg5[%c0_21, %c0_22] : memref<1x128xf32, #tpu.memory_space<vmem>>, vector<1x128xf32>
      tpu.vector_store %arg5[%c0_21, %c0_22], %31 {strides = array<i32>} : memref<1x128xf32, #tpu.memory_space<vmem>>, vector<1x128xf32>,
      %cst_23 = arith.constant 0.000000e+00 : f32
      %33 = vector.broadcast %cst_23 : f32 to vector<1x128xf32>
      %c0_24 = arith.constant 0 : index
      %c0_25 = arith.constant 0 : index
      %34 = vector.load %arg6[%c0_24, %c0_25] : memref<1x128xf32, #tpu.memory_space<vmem>>, vector<1x128xf32>
      tpu.vector_store %arg6[%c0_24, %c0_25], %33 {strides = array<i32>} : memref<1x128xf32, #tpu.memory_space<vmem>>, vector<1x128xf32>,
    } else {
    }
    %c0 = arith.constant 0 : index
    %c0_1 = arith.constant 0 : index
    %3 = vector.load %arg1[%c0, %c0_1] : memref<32x128xbf16, #tpu.memory_space<vmem>>, vector<32x128xbf16>
    %c0_2 = arith.constant 0 : index
    %c0_3 = arith.constant 0 : index
    %4 = vector.load %arg2[%c0_2, %c0_3] : memref<128x128xbf16, #tpu.memory_space<vmem>>, vector<128x128xbf16>
    %cst = arith.constant dense<0.000000e+00> : vector<32x128xf32>
    %5 = tpu.matmul %3, %4, %cst {dimension_numbers = #tpu.dot_dimension_numbers<[1], [0], [0], [1], [0, 0, 1, 1], [], []>} : vector<32x128xbf16>, vector<128x128xbf16>, vector<32x128xf32> -> vector<32x128xf32>
    %c0_4 = arith.constant 0 : index
    %c0_5 = arith.constant 0 : index
    %6 = vector.load %arg3[%c0_4, %c0_5] : memref<1x128xf32, #tpu.memory_space<vmem>>, vector<1x128xf32>
    %7 = vector.broadcast %6 : vector<1x128xf32> to vector<32x128xf32>
    %8 = arith.addf %5, %7 : vector<32x128xf32>
    %c0_6 = arith.constant 0 : index
    %c0_7 = arith.constant 0 : index
    %9 = vector.load %arg4[%c0_6, %c0_7] : memref<32x128xf32, #tpu.memory_space<vmem>>, vector<32x128xf32>
    tpu.vector_store %arg4[%c0_6, %c0_7], %8 {strides = array<i32>} : memref<32x128xf32, #tpu.memory_space<vmem>>, vector<32x128xf32>,
    %c32_i32 = arith.constant 32 : i32
    %10 = arith.muli %arg0, %c32_i32 : i32
    %11 = tpu.iota {dimensions = array<i32: 0>} : vector<32x1xi32>
    %12 = vector.broadcast %10 : i32 to vector<32x1xi32>
    %13 = arith.addi %12, %11 : vector<32x1xi32>
    %c32_i32_8 = arith.constant 32 : i32
    %14 = vector.broadcast %c32_i32_8 : i32 to vector<32x1xi32>
    %15 = arith.cmpi slt, %13, %14 : vector<32x1xi32>
    %cst_9 = arith.constant 0.000000e+00 : f32
    %16 = vector.shape_cast %15 : vector<32x1xi1> to vector<32x1xi1>
    %17 = vector.broadcast %16 : vector<32x1xi1> to vector<32x128xi1>
    %18 = vector.broadcast %cst_9 : f32 to vector<32x128xf32>
    %19 = arith.select %17, %8, %18 : vector<32x128xi1>, vector<32x128xf32>
    %c0_10 = arith.constant 0 : index
    %c0_11 = arith.constant 0 : index
    %20 = vector.load %arg5[%c0_10, %c0_11] : memref<1x128xf32, #tpu.memory_space<vmem>>, vector<1x128xf32>
    %cst_12 = arith.constant dense<0.000000e+00> : vector<128xf32>
    %21 = vector.multi_reduction <add>, %19, %cst_12 [0] : vector<32x128xf32> to vector<128xf32>
    %22 = vector.shape_cast %21 : vector<128xf32> to vector<1x128xf32>
    %23 = arith.addf %20, %22 : vector<1x128xf32>
    %c0_13 = arith.constant 0 : index
    %c0_14 = arith.constant 0 : index
    %24 = vector.load %arg5[%c0_13, %c0_14] : memref<1x128xf32, #tpu.memory_space<vmem>>, vector<1x128xf32>
    tpu.vector_store %arg5[%c0_13, %c0_14], %23 {strides = array<i32>} : memref<1x128xf32, #tpu.memory_space<vmem>>, vector<1x128xf32>,
    %c0_15 = arith.constant 0 : index
    %c0_16 = arith.constant 0 : index
    %25 = vector.load %arg6[%c0_15, %c0_16] : memref<1x128xf32, #tpu.memory_space<vmem>>, vector<1x128xf32>
    %26 = arith.mulf %19, %19 : vector<32x128xf32>
    %cst_17 = arith.constant dense<0.000000e+00> : vector<128xf32>
    %27 = vector.multi_reduction <add>, %26, %cst_17 [0] : vector<32x128xf32> to vector<128xf32>
    %28 = vector.shape_cast %27 : vector<128xf32> to vector<1x128xf32>
    %29 = arith.addf %25, %28 : vector<1x128xf32>
    %c0_18 = arith.constant 0 : index
    %c0_19 = arith.constant 0 : index
    %30 = vector.load %arg6[%c0_18, %c0_19] : memref<1x128xf32, #tpu.memory_space<vmem>>, vector<1x128xf32>
    tpu.vector_store %arg6[%c0_18, %c0_19], %29 {strides = array<i32>} : memref<1x128xf32, #tpu.memory_space<vmem>>, vector<1x128xf32>,
    return
  }
  func.func @transform_0(%arg0: i32) -> (i32, i32) {
    %c0_i32 = arith.constant 0 : i32
    %c0_i32_0 = arith.constant 0 : i32
    return %arg0, %c0_i32 : i32, i32
  }
  func.func @transform_1(%arg0: i32) -> (i32, i32) {
    %c0_i32 = arith.constant 0 : i32
    %c0_i32_0 = arith.constant 0 : i32
    %c0_i32_1 = arith.constant 0 : i32
    return %c0_i32, %c0_i32_0 : i32, i32
  }
  func.func @transform_2(%arg0: i32) -> (i32, i32) {
    %c0_i32 = arith.constant 0 : i32
    %c0_i32_0 = arith.constant 0 : i32
    %c0_i32_1 = arith.constant 0 : i32
    return %c0_i32, %c0_i32_0 : i32, i32
  }
  func.func @transform_3(%arg0: i32) -> (i32, i32) {
    %c0_i32 = arith.constant 0 : i32
    %c0_i32_0 = arith.constant 0 : i32
    return %arg0, %c0_i32 : i32, i32
  }
  func.func @transform_4(%arg0: i32) -> (i32, i32) {
    %c0_i32 = arith.constant 0 : i32
    %c0_i32_0 = arith.constant 0 : i32
    %c0_i32_1 = arith.constant 0 : i32
    return %c0_i32, %c0_i32_0 : i32, i32
  }
  func.func @transform_5(%arg0: i32) -> (i32, i32) {
    %c0_i32 = arith.constant 0 : i32
    %c0_i32_0 = arith.constant 0 : i32
    %c0_i32_1 = arith.constant 0 : i32
    return %c0_i32, %c0_i32_0 : i32, i32
  }
}

</mosaic_0001>

<llo_original>
// kernel: patch_embed_forward.2
$region0: #{patch_embed_forward.2}
  #allocation0 [shape = 'u32[]', space=smem, size = 0x4, offset = 0x4, fixed_abs, tag = 'smem constant byte address 0x4 - core index']
  #allocation1 [shape = 'u32[72,128]{1,0:T(1,128)}', space=vmem, size = 0x9000, scoped, tag = 'internal scratch']
  %s0 = inlined_call_operand.vmem [shape: bf16[32,128], index: 0, kind: input, shape index: {}]
  %s1 = inlined_call_operand.vmem [shape: bf16[128,128], index: 1, kind: input, shape index: {}]
  %s2 = inlined_call_operand.vmem [shape: f32[1,128], index: 2, kind: input, shape index: {}]
  %s3 = inlined_call_operand.vmem [shape: f32[32,128], index: 3, kind: output, shape index: {0}]
  %s4 = inlined_call_operand.vmem [shape: f32[1,128], index: 4, kind: output, shape index: {1}]
  %s5 = inlined_call_operand.vmem [shape: f32[1,128], index: 5, kind: output, shape index: {2}]
  %6 = xla_tuple %s3, %s4, %s5
  %s7 = sld [smem:[#allocation0]]
  $region42: #{patch_embed_forward.2} parent=0
    _
  %s9 = ssub.s32 1, %s7
  %s10 = scalar_select 0, %s9, %s7
  // Predicated region
  $region2: #{patch_embed_forward.2} parent=0 // pred_check
    _
  $region3: #{patch_embed_forward.2} parent=0 // pred_check_branch
    %12 = sbr.rel (0) target = $region5
  $region4: #{patch_embed_forward.2} parent=0 // pred_region
    _
  $region5: #{patch_embed_forward.2} parent=0 // pred_fallthru
    _
  // Predicated region
  $region6: #{patch_embed_forward.2} parent=0 // pred_check
    _
  $region7: #{patch_embed_forward.2} parent=0 // pred_check_branch
    %14 = sbr.rel (0) target = $region9
  $region8: #{patch_embed_forward.2} parent=0 // pred_region
    _
  $region9: #{patch_embed_forward.2} parent=0 // pred_fallthru
    _
  // Predicated region
  $region10: #{patch_embed_forward.2} parent=0 // pred_check
    _
  $region11: #{patch_embed_forward.2} parent=0 // pred_check_branch
    %16 = sbr.rel (0) target = $region13
  $region12: #{patch_embed_forward.2} parent=0 // pred_region
    _
  $region13: #{patch_embed_forward.2} parent=0 // pred_fallthru
    _
  %p17 = scmp.eq.s32.totalorder 0, 0
  // Predicated region
  $region14: #{patch_embed_forward.2} parent=0 // pred_check
    %p18 = pneg %p17
  $region15: #{patch_embed_forward.2} parent=0 // pred_check_branch
    %20 = sbr.rel (%p18) target = $region17
  $region16: #{patch_embed_forward.2} parent=0 // pred_region
    %21 = vst [vmem:[%s4] sm:$0x1] 0.0
    %22 = vst [vmem:[%s5] sm:$0x1] 0.0
  $region17: #{patch_embed_forward.2} parent=0 // pred_fallthru
    _
  %v23 = vld [vmem:[%s0] sm:$0xf]
  %v24 = vld [vmem:[%s0 + $0x4] sm:$0xf]
  %v25 = vld [vmem:[%s0 + $0x8] sm:$0xf]
  %v26 = vld [vmem:[%s0 + $0xc] sm:$0xf]
  %v27 = vld [vmem:[%s1] sm:$0xf]
  %v28 = vld [vmem:[%s1 + $0x4] sm:$0xf]
  %v29 = vld [vmem:[%s1 + $0x8] sm:$0xf]
  %v30 = vld [vmem:[%s1 + $0xc] sm:$0xf]
  %v31 = vld [vmem:[%s1 + $0x10] sm:$0xf]
  %v32 = vld [vmem:[%s1 + $0x14] sm:$0xf]
  %v33 = vld [vmem:[%s1 + $0x18] sm:$0xf]
  %v34 = vld [vmem:[%s1 + $0x1c] sm:$0xf]
  %v35 = vld [vmem:[%s1 + $0x20] sm:$0xf]
  %v36 = vld [vmem:[%s1 + $0x24] sm:$0xf]
  %v37 = vld [vmem:[%s1 + $0x28] sm:$0xf]
  %v38 = vld [vmem:[%s1 + $0x2c] sm:$0xf]
  %v39 = vld [vmem:[%s1 + $0x30] sm:$0xf]
  %v40 = vld [vmem:[%s1 + $0x34] sm:$0xf]
  %v41 = vld [vmem:[%s1 + $0x38] sm:$0xf]
  %v42 = vld [vmem:[%s1 + $0x3c] sm:$0xf]
  %v43 = vld [vmem:[%s2] sm:$0x1]
  %v45 = vperm.slane %v43, 0
  %v51 = vunpack.c.l.b16 %v23
  %v52 = vunpack.c.l.b16 %v24
  %v53 = vunpack.c.l.b16 %v25
  %v54 = vunpack.c.l.b16 %v26
  %v55 = vpack.c.b16 %v52, %v51
  %v56 = vpack.c.b16 %v54, %v53
  %v75 = vunpack.c.l.b16 %v27
  %v76 = vunpack.c.l.b16 %v28
  %v77 = vunpack.c.l.b16 %v29
  %v78 = vunpack.c.l.b16 %v30
  %v79 = vunpack.c.l.b16 %v31
  %v80 = vunpack.c.l.b16 %v32
  %v81 = vunpack.c.l.b16 %v33
  %v82 = vunpack.c.l.b16 %v34
  %v83 = vunpack.c.l.b16 %v35
  %v84 = vunpack.c.l.b16 %v36
  %v85 = vunpack.c.l.b16 %v37
  %v86 = vunpack.c.l.b16 %v38
  %v87 = vunpack.c.l.b16 %v39
  %v88 = vunpack.c.l.b16 %v40
  %v89 = vunpack.c.l.b16 %v41
  %v90 = vunpack.c.l.b16 %v42
  %v91 = vpack.c.b16 %v76, %v75
  %v92 = vpack.c.b16 %v78, %v77
  %v93 = vpack.c.b16 %v80, %v79
  %v94 = vpack.c.b16 %v82, %v81
  %v95 = vpack.c.b16 %v84, %v83
  %v96 = vpack.c.b16 %v86, %v85
  %v97 = vpack.c.b16 %v88, %v87
  %v98 = vpack.c.b16 %v90, %v89
  %107 = vmatpush.bf16.msra.mxu0 %v98
  %108 = vmatpush.bf16.msra.mxu0 %v97
  %109 = vmatpush.bf16.msra.mxu0 %v96
  %110 = vmatpush.bf16.msra.mxu0 %v95
  %111 = vmatpush.bf16.msra.mxu0 %v94
  %112 = vmatpush.bf16.msra.mxu0 %v93
  %113 = vmatpush.bf16.msra.mxu0 %v92
  %114 = vmatpush.bf16.msra.mxu0 %v91
  %115 = vmatmul.bf16.gmra.mxu0 %v55
  %v116 = vpop.f32.mrf.mxu0
  %v117 = vadd.f32 %v45, %v116
  %v118 = vpop.f32.mrf.mxu0
  %v119 = vadd.f32 %v45, %v118
  %120 = vmatmul.bf16.gmra.mxu0 %v56
  %v121 = vpop.f32.mrf.mxu0
  %v122 = vadd.f32 %v45, %v121
  %v123 = vpop.f32.mrf.mxu0
  %v124 = vadd.f32 %v45, %v123
  %125 = vdwg.mxu0
  %126 = vst [vmem:[%s3] sm:$0xff] %v117
  %127 = vst [vmem:[%s3 + $0x8] sm:$0xff] %v119
  %128 = vst [vmem:[%s3 + $0x10] sm:$0xff] %v122
  %129 = vst [vmem:[%s3 + $0x18] sm:$0xff] %v124
  %s130 = smul.u32 0, 32
  %v131 = vlaneseq
  %v132 = vshrl.u32 %v131, 7
  %v133 = vadd.s32 %v132, 8
  %v134 = vadd.s32 %v132, 16
  %v135 = vadd.s32 %v132, 24
  %v136 = vstv %s130
  %v137 = vadd.s32 %v136, %v132
  %v138 = vadd.s32 %v136, %v133
  %v139 = vadd.s32 %v136, %v134
  %v140 = vadd.s32 %v136, %v135
  %vm141 = vcmp.lt.s32.totalorder %v137, 32
  %vm142 = vcmp.lt.s32.totalorder %v138, 32
  %vm143 = vcmp.lt.s32.totalorder %v139, 32
  %vm144 = vcmp.lt.s32.totalorder %v140, 32
  %v145 = vsel %vm141, 1, 0
  %v146 = vsel %vm142, 1, 0
  %v147 = vsel %vm143, 1, 0
  %v148 = vsel %vm144, 1, 0
  %vm149 = vcmp.eq.s32.totalorder %v145, 1
  %vm150 = vcmp.eq.s32.totalorder %v146, 1
  %vm151 = vcmp.eq.s32.totalorder %v147, 1
  %vm152 = vcmp.eq.s32.totalorder %v148, 1
  %v153 = vsel %vm149, %v117, 0.0
  %v154 = vsel %vm150, %v119, 0.0
  %v155 = vsel %vm151, %v122, 0.0
  %v156 = vsel %vm152, %v124, 0.0
  %v157 = vld [vmem:[%s4] sm:$0x1]
  %v158 = vadd.f32 %v153, %v154
  %v159 = vadd.f32 %v158, %v155
  %v160 = vadd.f32 %v159, %v156
  %v161 = vrot.slane %v160, 4
  %v162 = vadd.f32 %v160, %v161
  %v163 = vrot.slane %v162, 2
  %v164 = vadd.f32 %v162, %v163
  %v165 = vrot.slane %v164, 1
  %v166 = vadd.f32 %v164, %v165
  %v167 = vadd.f32 %v157, %v166
  %168 = vst [vmem:[%s4] sm:$0x1] %v167
  %v169 = vld [vmem:[%s5] sm:$0x1]
  %v170 = vmul.f32 %v153, %v153
  %v171 = vmul.f32 %v154, %v154
  %v172 = vmul.f32 %v155, %v155
  %v173 = vmul.f32 %v156, %v156
  %v174 = vadd.f32 %v170, %v171
  %v175 = vadd.f32 %v174, %v172
  %v176 = vadd.f32 %v175, %v173
  %v177 = vrot.slane %v176, 4
  %v178 = vadd.f32 %v176, %v177
  %v179 = vrot.slane %v178, 2
  %v180 = vadd.f32 %v178, %v179
  %v181 = vrot.slane %v180, 1
  %v182 = vadd.f32 %v180, %v181
  %v183 = vadd.f32 %v169, %v182
  %184 = vst [vmem:[%s5] sm:$0x1] %v183
  // Predicated region
  $region18: #{patch_embed_forward.2} parent=0 // pred_check
    _
  $region19: #{patch_embed_forward.2} parent=0 // pred_check_branch
    %186 = sbr.rel (0) target = $region21
  $region20: #{patch_embed_forward.2} parent=0 // pred_region
    _
  $region21: #{patch_embed_forward.2} parent=0 // pred_fallthru
    _
  // Predicated region
  $region22: #{patch_embed_forward.2} parent=0 // pred_check
    _
  $region23: #{patch_embed_forward.2} parent=0 // pred_check_branch
    %188 = sbr.rel (0) target = $region25
  $region24: #{patch_embed_forward.2} parent=0 // pred_region
    _
  $region25: #{patch_embed_forward.2} parent=0 // pred_fallthru
    _
  // Predicated region
  $region26: #{patch_embed_forward.2} parent=0 // pred_check
    _
  $region27: #{patch_embed_forward.2} parent=0 // pred_check_branch
    %190 = sbr.rel (0) target = $region29
  $region28: #{patch_embed_forward.2} parent=0 // pred_region
    _
  $region29: #{patch_embed_forward.2} parent=0 // pred_fallthru
    _
  // Predicated region
  $region30: #{patch_embed_forward.2} parent=0 // pred_check
    _
  $region31: #{patch_embed_forward.2} parent=0 // pred_check_branch
    %192 = sbr.rel (0) target = $region33
  $region32: #{patch_embed_forward.2} parent=0 // pred_region
    _
  $region33: #{patch_embed_forward.2} parent=0 // pred_fallthru
    _
  // Predicated region
  $region34: #{patch_embed_forward.2} parent=0 // pred_check
    _
  $region35: #{patch_embed_forward.2} parent=0 // pred_check_branch
    %194 = sbr.rel (0) target = $region37
  $region36: #{patch_embed_forward.2} parent=0 // pred_region
    _
  $region37: #{patch_embed_forward.2} parent=0 // pred_fallthru
    _
  // Predicated region
  $region38: #{patch_embed_forward.2} parent=0 // pred_check
    _
  $region39: #{patch_embed_forward.2} parent=0 // pred_check_branch
    %196 = sbr.rel (0) target = $region41
  $region40: #{patch_embed_forward.2} parent=0 // pred_region
    _
  $region41: #{patch_embed_forward.2} parent=0 // pred_fallthru
    _

// kernel: patch_embed_forward.3
$region0: #{patch_embed_forward.3}
  #allocation0 [shape = 'u32[]', space=smem, size = 0x4, offset = 0x4, fixed_abs, tag = 'smem constant byte address 0x4 - core index']
  #allocation1 [shape = 'u32[72,128]{1,0:T(1,128)}', space=vmem, size = 0x9000, scoped, tag = 'internal scratch']
  %s0 = inlined_call_operand.vmem [shape: f32[2,6,6,128], index: 0, kind: input, shape index: {}]
  %s1 = inlined_call_operand.vmem [shape: f32[1,128], index: 1, kind: input, shape index: {}]
  %s2 = inlined_call_operand.vmem [shape: f32[1,128], index: 2, kind: input, shape index: {}]
  %s3 = inlined_call_operand.vmem [shape: f32[9,128], index: 3, kind: input, shape index: {}]
  %s4 = inlined_call_operand.vmem [shape: f32[1,128], index: 4, kind: input, shape index: {}]
  %s5 = inlined_call_operand.hbm [shape: f32[2,4,4,128], index: 5, kind: output, shape index: {}]
  %s6 = sld [smem:[#allocation0]]
  $region53: #{patch_embed_forward.3} parent=0
    _
  %s8 = ssub.s32 1, %s6
  %s9 = scalar_select 0, %s8, %s6
  $region1: #{patch_embed_forward.3} parent=0
    #allocation2 [shape = 'u8[16384]{0}', space=vmem, size = 0x4000, scoped, tag = 'output window, operand 0']
    #allocation3 [shape = 's32[2]{0}', space=sflag, size = 0x8, scoped, tag = 'scoped memory for patch_embed_forward.3']
    %10 = vsyncpa [#allocation3], 0
    %s11 = scalar_lea.sflag [#allocation3], 1
    %12 = vsyncpa %s11, 0
    loop: start=0, step=1, limit=4
    $region2: #{patch_embed_forward.3} parent=1 // loop_pre_header
      _
    $region3: #{patch_embed_forward.3} parent=1 // loop_header
      %s14 = sphi 0, %s18
      %p15 = scmp.ge.s32.totalorder %s14, 4
      %s24 = sphi 0, %s26
      %s27 = sphi 0, %s24
      %s28 = sphi 0, %s27
      %s44 = sphi 0, %s28
      %s48 = sphi 0, %s48
      %s50 = sphi 0, %s48
      %s51 = sphi 0, %s50
      %s65 = sphi 0, %s51
      %s69 = sphi 0, %s69
      %s71 = sphi 0, %s69
      %s72 = sphi 0, %s71
      %s86 = sphi 0, %s72
      %s90 = sphi 0, %s90
      %s92 = sphi 0, %s90
      %s93 = sphi 0, %s92
      %s107 = sphi 0, %s93
      %s111 = sphi 0, %s111
      %s113 = sphi 0, %s111
      %s114 = sphi 0, %s113
      %s128 = sphi 0, %s114
      %s134 = sphi 0, %s136
      %s137 = sphi 0, %s134
      %s138 = sphi 0, %s137
      %s154 = sphi 0, %s138
    $region4: #{patch_embed_forward.3} parent=1 // loop_header_branch
      %17 = sbr.rel (%p15) target = $region8
    $region5: #{patch_embed_forward.3} parent=1 // loop_body
      %s19 = ssub.s32 %s14, 1
      %s20 = ssub.s32 %s14, 2
      %s21 = sadd.s32 %s14, 1
      %s22 = ssub.s32 %s14, %s21
      %p23 = scmp.eq.s32.totalorder %s22, 0
      %s25 = sadd.s32 %s24, 1
      %s26 = scalar_select %p23, %s24, %s25
      %p29 = pneg %p23
      %p30 = scmp.eq.s32.totalorder %s14, 1
      %p31 = por %p29, %p30
      %p32 = scmp.ne.s32.totalorder %s24, %s27
      %p33 = scmp.eq.s32.totalorder %s14, 0
      %p34 = por %p32, %p33
      %p35 = scmp.ne.s32.totalorder %s24, %s27
      %p36 = scmp.eq.s32.totalorder %s19, 1
      %p37 = por %p35, %p36
      %p38 = scmp.ne.s32.totalorder %s27, %s28
      %p39 = scmp.eq.s32.totalorder %s19, 0
      %p40 = por %p38, %p39
      %p41 = scmp.ne.s32.totalorder %s27, %s28
      %p42 = scmp.eq.s32.totalorder %s20, 1
      %p43 = por %p41, %p42
      %p45 = scmp.ne.s32.totalorder %s28, %s44
      %p46 = scmp.eq.s32.totalorder %s20, 0
      %p47 = por %p45, %p46
      %s49 = sadd.s32 %s48, 1
      %p52 = scmp.eq.s32.totalorder %s14, 1
      %p53 = scmp.ne.s32.totalorder %s48, %s50
      %p54 = scmp.eq.s32.totalorder %s14, 0
      %p55 = por %p53, %p54
      %p56 = scmp.ne.s32.totalorder %s48, %s50
      %p57 = scmp.eq.s32.totalorder %s19, 1
      %p58 = por %p56, %p57
      %p59 = scmp.ne.s32.totalorder %s50, %s51
      %p60 = scmp.eq.s32.totalorder %s19, 0
      %p61 = por %p59, %p60
      %p62 = scmp.ne.s32.totalorder %s50, %s51
      %p63 = scmp.eq.s32.totalorder %s20, 1
      %p64 = por %p62, %p63
      %p66 = scmp.ne.s32.totalorder %s51, %s65
      %p67 = scmp.eq.s32.totalorder %s20, 0
      %p68 = por %p66, %p67
      %s70 = sadd.s32 %s69, 1
      %p73 = scmp.eq.s32.totalorder %s14, 1
      %p74 = scmp.ne.s32.totalorder %s69, %s71
      %p75 = scmp.eq.s32.totalorder %s14, 0
      %p76 = por %p74, %p75
      %p77 = scmp.ne.s32.totalorder %s69, %s71
      %p78 = scmp.eq.s32.totalorder %s19, 1
      %p79 = por %p77, %p78
      %p80 = scmp.ne.s32.totalorder %s71, %s72
      %p81 = scmp.eq.s32.totalorder %s19, 0
      %p82 = por %p80, %p81
      %p83 = scmp.ne.s32.totalorder %s71, %s72
      %p84 = scmp.eq.s32.totalorder %s20, 1
      %p85 = por %p83, %p84
      %p87 = scmp.ne.s32.totalorder %s72, %s86
      %p88 = scmp.eq.s32.totalorder %s20, 0
      %p89 = por %p87, %p88
      %s91 = sadd.s32 %s90, 1
      %p94 = scmp.eq.s32.totalorder %s14, 1
      %p95 = scmp.ne.s32.totalorder %s90, %s92
      %p96 = scmp.eq.s32.totalorder %s14, 0
      %p97 = por %p95, %p96
      %p98 = scmp.ne.s32.totalorder %s90, %s92
      %p99 = scmp.eq.s32.totalorder %s19, 1
      %p100 = por %p98, %p99
      %p101 = scmp.ne.s32.totalorder %s92, %s93
      %p102 = scmp.eq.s32.totalorder %s19, 0
      %p103 = por %p101, %p102
      %p104 = scmp.ne.s32.totalorder %s92, %s93
      %p105 = scmp.eq.s32.totalorder %s20, 1
      %p106 = por %p104, %p105
      %p108 = scmp.ne.s32.totalorder %s93, %s107
      %p109 = scmp.eq.s32.totalorder %s20, 0
      %p110 = por %p108, %p109
      %s112 = sadd.s32 %s111, 1
      %p115 = scmp.eq.s32.totalorder %s14, 1
      %p116 = scmp.ne.s32.totalorder %s111, %s113
      %p117 = scmp.eq.s32.totalorder %s14, 0
      %p118 = por %p116, %p117
      %p119 = scmp.ne.s32.totalorder %s111, %s113
      %p120 = scmp.eq.s32.totalorder %s19, 1
      %p121 = por %p119, %p120
      %p122 = scmp.ne.s32.totalorder %s113, %s114
      %p123 = scmp.eq.s32.totalorder %s19, 0
      %p124 = por %p122, %p123
      %p125 = scmp.ne.s32.totalorder %s113, %s114
      %p126 = scmp.eq.s32.totalorder %s20, 1
      %p127 = por %p125, %p126
      %p129 = scmp.ne.s32.totalorder %s114, %s128
      %p130 = scmp.eq.s32.totalorder %s20, 0
      %p131 = por %p129, %p130
      %s132 = ssub.s32 %s14, %s21
      %p133 = scmp.eq.s32.totalorder %s132, 0
      %s135 = sadd.s32 %s134, 1
      %s136 = scalar_select %p133, %s134, %s135
      %p139 = pneg %p133
      %p140 = scmp.eq.s32.totalorder %s14, 1
      %p141 = por %p139, %p140
      %p142 = scmp.ne.s32.totalorder %s134, %s137
      %p143 = scmp.eq.s32.totalorder %s14, 0
      %p144 = por %p142, %p143
      %p145 = scmp.ne.s32.totalorder %s134, %s137
      %p146 = scmp.eq.s32.totalorder %s19, 1
      %p147 = por %p145, %p146
      %p148 = scmp.ne.s32.totalorder %s137, %s138
      %p149 = scmp.eq.s32.totalorder %s19, 0
      %p150 = por %p148, %p149
      %p151 = scmp.ne.s32.totalorder %s137, %s138
      %p152 = scmp.eq.s32.totalorder %s20, 1
      %p153 = por %p151, %p152
      %p155 = scmp.ne.s32.totalorder %s138, %s154
      %p156 = scmp.eq.s32.totalorder %s20, 0
      %p157 = por %p155, %p156
      %p158 = scmp.le.s32.totalorder 1, %s14
      %p159 = scmp.lt.s32.totalorder %s14, 3
      %p160 = pnand %p158, %p159
      %p161 = pneg %p160
      // Predicated region
      $region9: #{patch_embed_forward.3} parent=5 // pred_check
        _
      $region10: #{patch_embed_forward.3} parent=5 // pred_check_branch
        %163 = sbr.rel (%p160) target = $region12
      $region11: #{patch_embed_forward.3} parent=5 // pred_region
        %s164 = ssub.s32 %s14, 1
        // Predicated region
        $region13: #{patch_embed_forward.3} parent=11 // pred_check
          %p165 = pneg %p61
        $region14: #{patch_embed_forward.3} parent=11 // pred_check_branch
          %167 = sbr.rel (%p165) target = $region16
        $region15: #{patch_embed_forward.3} parent=11 // pred_region
          _
        $region16: #{patch_embed_forward.3} parent=11 // pred_fallthru
          _
        // Predicated region
        $region17: #{patch_embed_forward.3} parent=11 // pred_check
          %p168 = pneg %p82
        $region18: #{patch_embed_forward.3} parent=11 // pred_check_branch
          %170 = sbr.rel (%p168) target = $region20
        $region19: #{patch_embed_forward.3} parent=11 // pred_region
          _
        $region20: #{patch_embed_forward.3} parent=11 // pred_fallthru
          _
        // Predicated region
        $region21: #{patch_embed_forward.3} parent=11 // pred_check
          %p171 = pneg %p103
        $region22: #{patch_embed_forward.3} parent=11 // pred_check_branch
          %173 = sbr.rel (%p171) target = $region24
        $region23: #{patch_embed_forward.3} parent=11 // pred_region
          _
        $region24: #{patch_embed_forward.3} parent=11 // pred_fallthru
          _
        // Predicated region
        $region25: #{patch_embed_forward.3} parent=11 // pred_check
          %p174 = pneg %p124
        $region26: #{patch_embed_forward.3} parent=11 // pred_check_branch
          %176 = sbr.rel (%p174) target = $region28
        $region27: #{patch_embed_forward.3} parent=11 // pred_region
          _
        $region28: #{patch_embed_forward.3} parent=11 // pred_fallthru
          _
      $region12: #{patch_embed_forward.3} parent=5 // pred_fallthru
        _
      %p177 = scmp.lt.s32.totalorder %s14, 2
      // Predicated region
      $region29: #{patch_embed_forward.3} parent=5 // pred_check
        %p178 = pneg %p177
      $region30: #{patch_embed_forward.3} parent=5 // pred_check_branch
        %180 = sbr.rel (%p178) target = $region32
      $region31: #{patch_embed_forward.3} parent=5 // pred_region
        // Predicated region
        $region33: #{patch_embed_forward.3} parent=31 // pred_check
          %p181 = pneg %p34
        $region34: #{patch_embed_forward.3} parent=31 // pred_check_branch
          %183 = sbr.rel (%p181) target = $region36
        $region35: #{patch_embed_forward.3} parent=31 // pred_region
          %p184 = scmp.lt.s32.totalorder %s14, 1
          %s185 = scalar_select %p184, %s14, 1
          %s186 = smul.addr %s185, 6
          %s187 = smul.addr %s186, 8
          %s188 = scalar_lea.vmem %s0, %s187
        $region36: #{patch_embed_forward.3} parent=31 // pred_fallthru
          _
      $region32: #{patch_embed_forward.3} parent=5 // pred_fallthru
        _
      %p189 = scmp.le.s32.totalorder 1, %s14
      %p190 = scmp.lt.s32.totalorder %s14, 3
      %p191 = pnand %p189, %p190
      %p192 = pneg %p191
      // Predicated region
      $region37: #{patch_embed_forward.3} parent=5 // pred_check
        _
      $region38: #{patch_embed_forward.3} parent=5 // pred_check_branch
        %194 = sbr.rel (%p191) target = $region40
      $region39: #{patch_embed_forward.3} parent=5 // pred_region
        %s195 = ssub.s32 %s14, 1
        %p196 = scmp.lt.s32.totalorder %s19, 1
        %s197 = scalar_select %p196, %s19, 1
        %s198 = smul.addr %s197, 6
        %s199 = smul.addr %s198, 8
        %s200 = scalar_lea.vmem %s0, %s199
        %p201 = pneg %p40
        %p202 = pneg %p37
        %p203 = pneg %p61
        %p204 = pneg %p58
        %p205 = pneg %p82
        %p206 = pneg %p79
        %p207 = pneg %p103
        %p208 = pneg %p100
        %p209 = pneg %p124
        %p210 = pneg %p121
        %p211 = pneg %p150
        %p212 = pneg %p147
        %s213 = sand.u32 %s137, 1
        %s214 = scalar_lea.sflag [#allocation3], %s213
        %s215 = sand.u32 %s137, 1
        %s216 = smul.addr %s215, 16
        %s217 = scalar_lea.vmem [#allocation2], %s216
        %p218 = scmp.lt.s32.totalorder %s19, 1
        %s219 = scalar_select %p218, %s19, 1
        %s220 = smul.addr %s219, 6
        %s221 = smul.addr %s220, 8
        %s222 = scalar_lea.vmem %s0, %s221
        %v223 = vld [vmem:[%s222] sm:$0x3f]
        %v224 = vld [vmem:[%s222 + $0x8] sm:$0x3f]
        %v225 = vld [vmem:[%s222 + $0x10] sm:$0x3f]
        %v226 = vld [vmem:[%s222 + $0x18] sm:$0x3f]
        %v227 = vld [vmem:[%s222 + $0x20] sm:$0x3f]
        %v228 = vld [vmem:[%s222 + $0x28] sm:$0x3f]
        %v229 = vld [vmem:[%s1] sm:$0x1]
        %v230 = vld [vmem:[%s2] sm:$0x1]
        %v231 = vlaneseq
        %v232 = vshrl.u32 %v231, 7
        %vm233 = vcmp.ge.s32.totalorder %v232, 1
        %vm234 = vmand 0, %vm233
        %vm235 = vmand 1, %vm233
        %vm236 = vcmp.le.s32.totalorder %v232, 4
        %vm237 = vmand %vm234, %vm236
        %vm238 = vmand %vm235, %vm236
        %v240 = vperm.slane %v229, 0
        %v242 = vmul.f32 %v223, %v240
        %v243 = vmul.f32 %v224, %v240
        %v244 = vmul.f32 %v225, %v240
        %v245 = vmul.f32 %v226, %v240
        %v246 = vmul.f32 %v227, %v240
        %v247 = vmul.f32 %v228, %v240
        %v249 = vperm.slane %v230, 0
        %v251 = vadd.f32 %v242, %v249
        %v252 = vadd.f32 %v243, %v249
        %v253 = vadd.f32 %v244, %v249
        %v254 = vadd.f32 %v245, %v249
        %v255 = vadd.f32 %v246, %v249
        %v256 = vadd.f32 %v247, %v249
        %v257 = vsel %vm237, 1, 0
        %v258 = vsel %vm238, 1, 0
        %vm259 = vcmp.eq.s32.totalorder %v257, 1
        %vm260 = vcmp.eq.s32.totalorder %v258, 1
        %v261 = vsel %vm259, %v251, 0.0
        %v262 = vsel %vm260, %v252, 0.0
        %v263 = vsel %vm260, %v253, 0.0
        %v264 = vsel %vm260, %v254, 0.0
        %v265 = vsel %vm260, %v255, 0.0
        %v266 = vsel %vm259, %v256, 0.0
        %v267 = vld [vmem:[%s3] sm:$0xff]
        %v268 = vld [vmem:[%s3 + $0x8] sm:$0x1]
        %v269 = vld [vmem:[%s4] sm:$0x1]
        %v271 = vperm.slane %v269, 0
        %v273 = vadd.f32 %v271, 0.0
        %v274 = vperm.slane %v267, 0
        %v275 = vmul.f32 %v261, %v274
        %v276 = vmul.f32 %v262, %v274
        %v277 = vmul.f32 %v263, %v274
        %v278 = vmul.f32 %v264, %v274
        %v279 = vadd.f32 %v273, %v275
        %v280 = vadd.f32 %v273, %v276
        %v281 = vadd.f32 %v273, %v277
        %v282 = vadd.f32 %v273, %v278
        %v283 = vperm.slane %v267, 1
        %v284 = vmul.f32 %v261, %v283
        %v285 = vmul.f32 %v262, %v283
        %v286 = vmul.f32 %v263, %v283
        %v287 = vmul.f32 %v264, %v283
        %v292 = vrot.slane %v284, 1
        %v293 = vrot.slane %v285, 1
        %v294 = vrot.slane %v286, 1
        %v295 = vrot.slane %v287, 1
        %v300 = vadd.f32 %v279, %v292
        %v301 = vadd.f32 %v280, %v293
        %v302 = vadd.f32 %v281, %v294
        %v303 = vadd.f32 %v282, %v295
        %v304 = vperm.slane %v267, 2
        %v305 = vmul.f32 %v261, %v304
        %v306 = vmul.f32 %v262, %v304
        %v307 = vmul.f32 %v263, %v304
        %v308 = vmul.f32 %v264, %v304
        %v313 = vrot.slane %v305, 2
        %v314 = vrot.slane %v306, 2
        %v315 = vrot.slane %v307, 2
        %v316 = vrot.slane %v308, 2
        %v321 = vadd.f32 %v300, %v313
        %v322 = vadd.f32 %v301, %v314
        %v323 = vadd.f32 %v302, %v315
        %v324 = vadd.f32 %v303, %v316
        %v325 = vperm.slane %v267, 3
        %v326 = vmul.f32 %v262, %v325
        %v327 = vmul.f32 %v263, %v325
        %v328 = vmul.f32 %v264, %v325
        %v329 = vmul.f32 %v265, %v325
        %v330 = vadd.f32 %v321, %v326
        %v331 = vadd.f32 %v322, %v327
        %v332 = vadd.f32 %v323, %v328
        %v333 = vadd.f32 %v324, %v329
        %v334 = vperm.slane %v267, 4
        %v335 = vmul.f32 %v262, %v334
        %v336 = vmul.f32 %v263, %v334
        %v337 = vmul.f32 %v264, %v334
        %v338 = vmul.f32 %v265, %v334
        %v343 = vrot.slane %v335, 1
        %v344 = vrot.slane %v336, 1
        %v345 = vrot.slane %v337, 1
        %v346 = vrot.slane %v338, 1
        %v351 = vadd.f32 %v330, %v343
        %v352 = vadd.f32 %v331, %v344
        %v353 = vadd.f32 %v332, %v345
        %v354 = vadd.f32 %v333, %v346
        %v355 = vperm.slane %v267, 5
        %v356 = vmul.f32 %v262, %v355
        %v357 = vmul.f32 %v263, %v355
        %v358 = vmul.f32 %v264, %v355
        %v359 = vmul.f32 %v265, %v355
        %v364 = vrot.slane %v356, 2
        %v365 = vrot.slane %v357, 2
        %v366 = vrot.slane %v358, 2
        %v367 = vrot.slane %v359, 2
        %v372 = vadd.f32 %v351, %v364
        %v373 = vadd.f32 %v352, %v365
        %v374 = vadd.f32 %v353, %v366
        %v375 = vadd.f32 %v354, %v367
        %v376 = vperm.slane %v267, 6
        %v377 = vmul.f32 %v263, %v376
        %v378 = vmul.f32 %v264, %v376
        %v379 = vmul.f32 %v265, %v376
        %v380 = vmul.f32 %v266, %v376
        %v381 = vadd.f32 %v372, %v377
        %v382 = vadd.f32 %v373, %v378
        %v383 = vadd.f32 %v374, %v379
        %v384 = vadd.f32 %v375, %v380
        %v385 = vperm.slane %v267, 7
        %v386 = vmul.f32 %v263, %v385
        %v387 = vmul.f32 %v264, %v385
        %v388 = vmul.f32 %v265, %v385
        %v389 = vmul.f32 %v266, %v385
        %v394 = vrot.slane %v386, 1
        %v395 = vrot.slane %v387, 1
        %v396 = vrot.slane %v388, 1
        %v397 = vrot.slane %v389, 1
        %v402 = vadd.f32 %v381, %v394
        %v403 = vadd.f32 %v382, %v395
        %v404 = vadd.f32 %v383, %v396
        %v405 = vadd.f32 %v384, %v397
        %v406 = vperm.slane %v268, 0
        %v407 = vmul.f32 %v263, %v406
        %v408 = vmul.f32 %v264, %v406
        %v409 = vmul.f32 %v265, %v406
        %v410 = vmul.f32 %v266, %v406
        %v415 = vrot.slane %v407, 2
        %v416 = vrot.slane %v408, 2
        %v417 = vrot.slane %v409, 2
        %v418 = vrot.slane %v410, 2
        %v423 = vadd.f32 %v402, %v415
        %v424 = vadd.f32 %v403, %v416
        %v425 = vadd.f32 %v404, %v417
        %v426 = vadd.f32 %v405, %v418
        %v427 = vxor.u32 %v423, 2147483648
        %v428 = vxor.u32 %v424, 2147483648
        %v429 = vxor.u32 %v425, 2147483648
        %v430 = vxor.u32 %v426, 2147483648
        %v431 = vmul.f32 %v427, 1.442695
        %v432 = vpow.pop %v431
        %v433 = vmul.f32 %v428, 1.442695
        %v434 = vpow.pop %v433
        %v435 = vmul.f32 %v429, 1.442695
        %v436 = vpow.pop %v435
        %v437 = vmul.f32 %v430, 1.442695
        %v438 = vpow.pop %v437
        %v439 = vadd.f32 %v432, 1.0
        %v440 = vadd.f32 %v434, 1.0
        %v441 = vadd.f32 %v436, 1.0
        %v442 = vadd.f32 %v438, 1.0
        %v443 = vrcp.pop %v439
        %v444 = vmul.f32 %v439, %v443
        %v445 = vsub.f32 1.0, %v444
        %v446 = vmul.f32 %v443, %v445
        %v447 = vadd.f32 %v443, %v446
        %vm448 = vweird.f32 %v439
        %vm449 = vweird.f32 %v443
        %vm450 = vmor %vm448, %vm449
        %v451 = vsel %vm450, %v443, %v447
        %v452 = vand.u32 2147483647, %v439
        %vm453 = vcmp.eq.f32.partialorder %v452, 8.507059e+37
        %v454 = vand.u32 %v439, 2147483648
        %v455 = vor.u32 1.1754944e-38, %v454
        %v456 = vsel %vm453, %v455, %v451
        %v457 = vmul.f32 1.0, %v456
        %v458 = vrcp.pop %v440
        %v459 = vmul.f32 %v440, %v458
        %v460 = vsub.f32 1.0, %v459
        %v461 = vmul.f32 %v458, %v460
        %v462 = vadd.f32 %v458, %v461
        %vm463 = vweird.f32 %v440
        %vm464 = vweird.f32 %v458
        %vm465 = vmor %vm463, %vm464
        %v466 = vsel %vm465, %v458, %v462
        %v467 = vand.u32 2147483647, %v440
        %vm468 = vcmp.eq.f32.partialorder %v467, 8.507059e+37
        %v469 = vand.u32 %v440, 2147483648
        %v470 = vor.u32 1.1754944e-38, %v469
        %v471 = vsel %vm468, %v470, %v466
        %v472 = vmul.f32 1.0, %v471
        %v473 = vrcp.pop %v441
        %v474 = vmul.f32 %v441, %v473
        %v475 = vsub.f32 1.0, %v474
        %v476 = vmul.f32 %v473, %v475
        %v477 = vadd.f32 %v473, %v476
        %vm478 = vweird.f32 %v441
        %vm479 = vweird.f32 %v473
        %vm480 = vmor %vm478, %vm479
        %v481 = vsel %vm480, %v473, %v477
        %v482 = vand.u32 2147483647, %v441
        %vm483 = vcmp.eq.f32.partialorder %v482, 8.507059e+37
        %v484 = vand.u32 %v441, 2147483648
        %v485 = vor.u32 1.1754944e-38, %v484
        %v486 = vsel %vm483, %v485, %v481
        %v487 = vmul.f32 1.0, %v486
        %v488 = vrcp.pop %v442
        %v489 = vmul.f32 %v442, %v488
        %v490 = vsub.f32 1.0, %v489
        %v491 = vmul.f32 %v488, %v490
        %v492 = vadd.f32 %v488, %v491
        %vm493 = vweird.f32 %v442
        %vm494 = vweird.f32 %v488
        %vm495 = vmor %vm493, %vm494
        %v496 = vsel %vm495, %v488, %v492
        %v497 = vand.u32 2147483647, %v442
        %vm498 = vcmp.eq.f32.partialorder %v497, 8.507059e+37
        %v499 = vand.u32 %v442, 2147483648
        %v500 = vor.u32 1.1754944e-38, %v499
        %v501 = vsel %vm498, %v500, %v496
        %v502 = vmul.f32 1.0, %v501
        %v507 = vrot.slane %v457, 7
        %v508 = vrot.slane %v472, 7
        %v509 = vrot.slane %v487, 7
        %v510 = vrot.slane %v502, 7
        %v515 = vmul.f32 %v262, %v507
        %v516 = vmul.f32 %v263, %v508
        %v517 = vmul.f32 %v264, %v509
        %v518 = vmul.f32 %v265, %v510
        %519 = vst [vmem:[%s217 - $0x1] sm:$0x1e] %v515
        %520 = vst [vmem:[%s217 + $0x3] sm:$0x1e] %v516
        %521 = vst [vmem:[%s217 + $0x7] sm:$0x1e] %v517
        %522 = vst [vmem:[%s217 + $0xb] sm:$0x1e] %v518
        %s523 = sand.u32 %s137, 1
        %s524 = scalar_lea.sflag [#allocation3], %s523
        %s525 = sand.u32 %s137, 1
        %s526 = smul.addr %s525, 16
        %s527 = scalar_lea.vmem [#allocation2], %s526
        // Predicated region
        $region41: #{patch_embed_forward.3} parent=39 // pred_check
          %p528 = pneg %p147
        $region42: #{patch_embed_forward.3} parent=39 // pred_check_branch
          %530 = sbr.rel (%p528) target = $region44
        $region43: #{patch_embed_forward.3} parent=39 // pred_region
          %532 = vsyncadd %s524, 0
          %s533 = smul.addr %s19, 4
          %s534 = smul.addr %s533, 4
          %s535 = scalar_lea.hbm %s5, %s534
          %s536 = sshll.u32 %s527, 4
          %s537 = int_to_ptr.vmem [resolvable:$true] %s536
          %s538 = sshll.u32 %s535, 4
          %s539 = int_to_ptr.hbm [resolvable:$true] %s538
          %544 = dma.vmem_to_hbm [thread:$0]  %s537, 256, %s539, %s524, 64, 64, 4
        $region44: #{patch_embed_forward.3} parent=39 // pred_fallthru
          _
      $region40: #{patch_embed_forward.3} parent=5 // pred_fallthru
        _
      %p545 = scmp.le.s32.totalorder 2, %s14
      // Predicated region
      $region45: #{patch_embed_forward.3} parent=5 // pred_check
        %p546 = pneg %p545
      $region46: #{patch_embed_forward.3} parent=5 // pred_check_branch
        %548 = sbr.rel (%p546) target = $region48
      $region47: #{patch_embed_forward.3} parent=5 // pred_region
        %s549 = ssub.s32 %s14, 2
        // Predicated region
        $region49: #{patch_embed_forward.3} parent=47 // pred_check
          %p550 = pneg %p153
        $region50: #{patch_embed_forward.3} parent=47 // pred_check_branch
          %552 = sbr.rel (%p550) target = $region52
        $region51: #{patch_embed_forward.3} parent=47 // pred_region
          %s553 = sand.u32 %s138, 1
          %s554 = scalar_lea.sflag [#allocation3], %s553
          %s555 = sand.u32 %s138, 1
          %s556 = smul.addr %s555, 16
          %s557 = scalar_lea.vmem [#allocation2], %s556
          %559 = dma.done %s554, 256
        $region52: #{patch_embed_forward.3} parent=47 // pred_fallthru
          _
      $region48: #{patch_embed_forward.3} parent=5 // pred_fallthru
        _
    $region6: #{patch_embed_forward.3} parent=1 // loop_footer
      %s18 = sadd.s32 1, %s14
    $region7: #{patch_embed_forward.3} parent=1 // loop_footer_branch
      %13 = sbr.rel target = $region3
    $region8: #{patch_embed_forward.3} parent=1 // loop_exit
      _
    %560 = vsyncpa [#allocation3], 1
    %s561 = scalar_lea.sflag [#allocation3], 1
    %562 = vsyncpa %s561, 1

</llo_original>
